<compile_context>
chip_gen: v7x
topology: tpu7x:2x2x1
jax: 0.10.0
libtpu: 0.0.40
codegen_flags: <defaults>
</compile_context>

<pallas_src>
import jax
import jax.numpy as jnp
from jax.experimental import pallas as pl
from jax.experimental.pallas import tpu as pltpu

D_IN, D_H1, D_H2 = 256, 128, 64
LANE = 128


def _round_up(v, m):
    return ((v + m - 1) // m) * m


def _ins_cls_kernel(x_ref, w1_ref, b1_ref, w23_ref, b23_ref, o_ref):
    # (tm, 256) rows -> (tm, 128) f32 hidden -> (tm, out_pad) bf16 sigmoid
    x = x_ref[...].astype(jnp.bfloat16)            # in-kernel cast: no extra HBM pass
    h1 = jnp.dot(x, w1_ref[...], preferred_element_type=jnp.float32) + b1_ref[...]
    h1 = jnp.maximum(h1, 0.0)                      # dc_relu1
    # dc_relu2 intentionally skipped (matches the PyTorch forward); layers 2+3
    # are pre-fused into w23/b23 in the wrapper.
    logits = jnp.dot(h1.astype(jnp.bfloat16), w23_ref[...],
                     preferred_element_type=jnp.float32) + b23_ref[...]
    # sigmoid(z) = 1 / (1 + exp(-z)); exp and approx-reciprocal both go to the EUP.
    sig = pl.reciprocal(1.0 + jnp.exp(-logits), approx=True)
    o_ref[...] = sig.astype(o_ref.dtype)


def ins_cls_forward(x, params, *, tm=2048, min_grid_steps=2):
    """x: (N, 256) float32 (or bf16).  Returns (N, num_cls) float32."""
    w1, b1, w2, b2, w3, b3 = params
    n = x.shape[0]
    num_cls = w3.shape[1]

    # ---- offline algebra (tiny tensors, once per call) ----------------------
    w23 = w2 @ w3                     # (128, num_cls)  exact affine fusion
    b23 = b2 @ w3 + b3                # (1, num_cls)

    # Pad fused output dim to a lane-dense multiple of 128 (unmasked stores).
    out_pad = max(LANE, _round_up(num_cls, LANE))
    w23 = jnp.pad(w23, ((0, 0), (0, out_pad - num_cls)))
    b23 = jnp.pad(b23, ((0, 0), (0, out_pad - num_cls)))

    w1b = w1.astype(jnp.bfloat16)
    w23b = w23.astype(jnp.bfloat16)
    b1f = b1.astype(jnp.float32)
    b23f = b23.astype(jnp.float32)

    # Row tile: large for HBM-bound throughput, but capped so the parallel grid
    # axis has >= min_grid_steps steps (keeps both v7x TensorCores busy).
    # Always a multiple of 8 (sublane constraint); batch is NOT padded.
    tm_cap = max(8, _round_up(pl.cdiv(n, min_grid_steps), 8))
    tm_eff = max(8, min(tm, tm_cap, _round_up(n, 8)))
    n_steps = pl.cdiv(n, tm_eff)
    grid = (n_steps,)

    full = lambda i: (0, 0)           # weights / biases: whole-array resident blocks

    # Deeper buffering on the dominant x stream when there are enough steps.
    x_spec_kwargs = {}
    if n_steps >= 3:
        x_spec_kwargs["pipeline_mode"] = pl.Buffered(3)
    x_spec = pl.BlockSpec((tm_eff, D_IN), lambda i: (i, 0), **x_spec_kwargs)

    # VMEM: x tile (<=2 MiB f32) x3 + out tile (<=0.5 MiB bf16) x2 + ~100 KiB
    # weights -> well under the 32 MiB scoped default on every gen; no
    # vmem_limit_bytes override needed.
    out = pl.pallas_call(
        _ins_cls_kernel,
        out_shape=jax.ShapeDtypeStruct((n, out_pad), jnp.bfloat16),
        grid_spec=pl.GridSpec(
            grid=grid,
            in_specs=[
                x_spec,                                            # x row tile
                pl.BlockSpec((D_IN, D_H1), full),                  # w1 (bf16)
                pl.BlockSpec((1, D_H1), full),                     # b1 (f32)
                pl.BlockSpec((D_H1, out_pad), full),               # fused w2@w3 (bf16, padded)
                pl.BlockSpec((1, out_pad), full),                  # fused bias (f32, padded)
            ],
            out_specs=pl.BlockSpec((tm_eff, out_pad), lambda i: (i, 0)),
        ),
        compiler_params=pltpu.CompilerParams(
            dimension_semantics=("parallel",)),
    )(x, w1b, b1f, w23b, b23f)

    # Half-width (bf16) padded slab -> tiny useful slice; cast back to f32 for
    # the module's API contract.
    return out[:, :num_cls].astype(jnp.float32)


def init_params(key, num_cls):
    """Deterministic init mimicking PyTorch nn.Linear default U(-1/sqrt(fan_in), ...)."""
    def linear(k, fan_in, fan_out):
        kw, kb = jax.random.split(k)
        bound = 1.0 / jnp.sqrt(fan_in)
        w = jax.random.uniform(kw, (fan_in, fan_out), jnp.float32, -bound, bound)
        b = jax.random.uniform(kb, (1, fan_out), jnp.float32, -bound, bound)
        return w, b

    k1, k2, k3 = jax.random.split(key, 3)
    w1, b1 = linear(k1, D_IN, D_H1)
    w2, b2 = linear(k2, D_H1, D_H2)
    w3, b3 = linear(k3, D_H2, num_cls)
    return (w1, b1, w2, b2, w3, b3)


def _reference(x, params):
    w1, b1, w2, b2, w3, b3 = params
    h = jnp.maximum(x @ w1 + b1, 0.0)
    h = h @ w2 + b2
    return jax.nn.sigmoid(h @ w3 + b3)


if __name__ == "__main__":
    num_cls = 8

    key = jax.random.PRNGKey(0)
    kx, kp, kx2 = jax.random.split(key, 3)
    params = init_params(kp, num_cls)

    # Case 1: batch divisible by the row tile (tm_eff=8 -> 2 grid steps).
    batch = 16
    x = jax.random.normal(kx, (batch, D_IN), dtype=jnp.float32)
    out = ins_cls_forward(x, params)
    jax.block_until_ready(out)
    ref = _reference(x, params)
    assert out.shape == (batch, num_cls)
    # bf16 inputs/weights/output + fused affine reorder + approx reciprocal:
    # sigmoid outputs agree to well under 2e-2 absolute.
    assert jnp.max(jnp.abs(out - ref)) < 2e-2, float(jnp.max(jnp.abs(out - ref)))

    # Case 2: ragged batch (no wrapper-side padding; Pallas masks the last block).
    batch2 = 13
    x2 = jax.random.normal(kx2, (batch2, D_IN), dtype=jnp.float32)
    out2 = ins_cls_forward(x2, params)
    jax.block_until_ready(out2)
    ref2 = _reference(x2, params)
    assert out2.shape == (batch2, num_cls)
    assert jnp.max(jnp.abs(out2 - ref2)) < 2e-2, float(jnp.max(jnp.abs(out2 - ref2)))

    print("KERNEL_OK")
</pallas_src>

<mosaic_0001>
module attributes {stable_mosaic.version = 11 : i64} {
  func.func @_ins_cls_kernel(%arg0: i32, %arg1: memref<8x256xf32, #tpu.memory_space<vmem>>, %arg2: memref<256x128xbf16, #tpu.memory_space<vmem>>, %arg3: memref<1x128xf32, #tpu.memory_space<vmem>>, %arg4: memref<128x128xbf16, #tpu.memory_space<vmem>>, %arg5: memref<1x128xf32, #tpu.memory_space<vmem>>, %arg6: memref<8x128xbf16, #tpu.memory_space<vmem>>) attributes {dimension_semantics = [#tpu.dimension_semantics<parallel>], iteration_bounds = array<i64: 2>, scalar_prefetch = 0 : i64, scratch_operands = 0 : i64, tpu.core_type = #tpu.core_type<tc>, window_params = [{transform_indices = @transform_0, window_bounds = array<i64: 8, 256>}, {pipeline_mode = #tpu.pipeline_mode<synchronous>, transform_indices = @transform_1, window_bounds = array<i64: 256, 128>}, {pipeline_mode = #tpu.pipeline_mode<synchronous>, transform_indices = @transform_2, window_bounds = array<i64: 1, 128>}, {pipeline_mode = #tpu.pipeline_mode<synchronous>, transform_indices = @transform_3, window_bounds = array<i64: 128, 128>}, {pipeline_mode = #tpu.pipeline_mode<synchronous>, transform_indices = @transform_4, window_bounds = array<i64: 1, 128>}, {transform_indices = @transform_5, window_bounds = array<i64: 8, 128>}]} {
    %c0 = arith.constant 0 : index
    %c0_0 = arith.constant 0 : index
    %0 = vector.load %arg1[%c0, %c0_0] : memref<8x256xf32, #tpu.memory_space<vmem>>, vector<8x256xf32>
    %1 = arith.truncf %0 : vector<8x256xf32> to vector<8x256xbf16>
    %c0_1 = arith.constant 0 : index
    %c0_2 = arith.constant 0 : index
    %2 = vector.load %arg2[%c0_1, %c0_2] : memref<256x128xbf16, #tpu.memory_space<vmem>>, vector<256x128xbf16>
    %cst = arith.constant dense<0.000000e+00> : vector<8x128xf32>
    %3 = tpu.matmul %1, %2, %cst {dimension_numbers = #tpu.dot_dimension_numbers<[1], [0], [0], [1], [0, 0, 1, 1], [], []>} : vector<8x256xbf16>, vector<256x128xbf16>, vector<8x128xf32> -> vector<8x128xf32>
    %c0_3 = arith.constant 0 : index
    %c0_4 = arith.constant 0 : index
    %4 = vector.load %arg3[%c0_3, %c0_4] : memref<1x128xf32, #tpu.memory_space<vmem>>, vector<1x128xf32>
    %5 = vector.broadcast %4 : vector<1x128xf32> to vector<8x128xf32>
    %6 = arith.addf %3, %5 : vector<8x128xf32>
    %cst_5 = arith.constant 0.000000e+00 : f32
    %7 = vector.broadcast %cst_5 : f32 to vector<8x128xf32>
    %8 = arith.maximumf %6, %7 : vector<8x128xf32>
    %9 = arith.truncf %8 : vector<8x128xf32> to vector<8x128xbf16>
    %c0_6 = arith.constant 0 : index
    %c0_7 = arith.constant 0 : index
    %10 = vector.load %arg4[%c0_6, %c0_7] : memref<128x128xbf16, #tpu.memory_space<vmem>>, vector<128x128xbf16>
    %cst_8 = arith.constant dense<0.000000e+00> : vector<8x128xf32>
    %11 = tpu.matmul %9, %10, %cst_8 {dimension_numbers = #tpu.dot_dimension_numbers<[1], [0], [0], [1], [0, 0, 1, 1], [], []>} : vector<8x128xbf16>, vector<128x128xbf16>, vector<8x128xf32> -> vector<8x128xf32>
    %c0_9 = arith.constant 0 : index
    %c0_10 = arith.constant 0 : index
    %12 = vector.load %arg5[%c0_9, %c0_10] : memref<1x128xf32, #tpu.memory_space<vmem>>, vector<1x128xf32>
    %13 = vector.broadcast %12 : vector<1x128xf32> to vector<8x128xf32>
    %14 = arith.addf %11, %13 : vector<8x128xf32>
    %cst_11 = arith.constant 0.000000e+00 : f32
    %15 = vector.broadcast %cst_11 : f32 to vector<8x128xf32>
    %16 = arith.subf %15, %14 : vector<8x128xf32>
    %17 = math.exp %16 : vector<8x128xf32>
    %cst_12 = arith.constant 1.000000e+00 : f32
    %18 = vector.broadcast %cst_12 : f32 to vector<8x128xf32>
    %19 = arith.addf %18, %17 : vector<8x128xf32>
    %20 = tpu.reciprocal %19 {approx = true} : vector<8x128xf32> -> vector<8x128xf32>
    %21 = arith.truncf %20 : vector<8x128xf32> to vector<8x128xbf16>
    %c0_13 = arith.constant 0 : index
    %c0_14 = arith.constant 0 : index
    %22 = vector.load %arg6[%c0_13, %c0_14] : memref<8x128xbf16, #tpu.memory_space<vmem>>, vector<8x128xbf16>
    tpu.vector_store %arg6[%c0_13, %c0_14], %21 {strides = array<i32>} : memref<8x128xbf16, #tpu.memory_space<vmem>>, vector<8x128xbf16>,
    return
  }
  func.func @transform_0(%arg0: i32) -> (i32, i32) {
    %c0_i32 = arith.constant 0 : i32
    %c0_i32_0 = arith.constant 0 : i32
    return %arg0, %c0_i32 : i32, i32
  }
  func.func @transform_1(%arg0: i32) -> (i32, i32) {
    %c0_i32 = arith.constant 0 : i32
    %c0_i32_0 = arith.constant 0 : i32
    %c0_i32_1 = arith.constant 0 : i32
    return %c0_i32, %c0_i32_0 : i32, i32
  }
  func.func @transform_2(%arg0: i32) -> (i32, i32) {
    %c0_i32 = arith.constant 0 : i32
    %c0_i32_0 = arith.constant 0 : i32
    %c0_i32_1 = arith.constant 0 : i32
    return %c0_i32, %c0_i32_0 : i32, i32
  }
  func.func @transform_3(%arg0: i32) -> (i32, i32) {
    %c0_i32 = arith.constant 0 : i32
    %c0_i32_0 = arith.constant 0 : i32
    %c0_i32_1 = arith.constant 0 : i32
    return %c0_i32, %c0_i32_0 : i32, i32
  }
  func.func @transform_4(%arg0: i32) -> (i32, i32) {
    %c0_i32 = arith.constant 0 : i32
    %c0_i32_0 = arith.constant 0 : i32
    %c0_i32_1 = arith.constant 0 : i32
    return %c0_i32, %c0_i32_0 : i32, i32
  }
  func.func @transform_5(%arg0: i32) -> (i32, i32) {
    %c0_i32 = arith.constant 0 : i32
    %c0_i32_0 = arith.constant 0 : i32
    return %arg0, %c0_i32 : i32, i32
  }
}

</mosaic_0001>

<llo_original>
// kernel: tpu_custom_call.1
$region0: #{tpu_custom_call.1}
  #allocation0 [shape = 'u32[]', space=smem, size = 0x4, offset = 0x4, fixed_abs, tag = 'smem constant byte address 0x4 - core index']
  #allocation1 [shape = 'u32[144,128]{1,0:T(1,128)}', space=vmem, size = 0x12000, scoped, tag = 'internal scratch']
  %s0 = inlined_call_operand.hbm [shape: f32[16,256], index: 0, kind: input, shape index: {}]
  %s1 = inlined_call_operand.hbm [shape: bf16[256,128], index: 1, kind: input, shape index: {}]
  %s2 = inlined_call_operand.vmem [shape: f32[1,128], index: 2, kind: input, shape index: {}]
  %s3 = inlined_call_operand.hbm [shape: bf16[128,128], index: 3, kind: input, shape index: {}]
  %s4 = inlined_call_operand.vmem [shape: f32[1,128], index: 4, kind: input, shape index: {}]
  %s5 = inlined_call_operand.hbm [shape: bf16[16,128], index: 5, kind: output, shape index: {}]
  %s6 = sld [smem:[#allocation0]]
  $region65: #{tpu_custom_call.1} parent=0
    _
  %s8 = ssub.s32 1, %s6
  %s9 = scalar_select 0, %s8, %s6
  $region1: #{tpu_custom_call.1} parent=0
    #allocation2 [shape = 'u8[16384]{0}', space=vmem, size = 0x4000, scoped, tag = 'input window, operand 0']
    #allocation3 [shape = 's32[2]{0}', space=sflag, size = 0x8, scoped, tag = 'scoped memory for tpu_custom_call.1']
    #allocation4 [shape = 's32[2]{0}', space=sflag, size = 0x8, scoped, tag = 'scoped memory for tpu_custom_call.1']
    #allocation5 [shape = 'u8[65536]{0}', space=vmem, size = 0x10000, scoped, tag = 'input window, operand 1, single buffered']
    #allocation6 [shape = 's32[1]{0}', space=sflag, size = 0x4, scoped, tag = 'scoped memory for tpu_custom_call.1']
    #allocation7 [shape = 'u8[32768]{0}', space=vmem, size = 0x8000, scoped, tag = 'input window, operand 3, single buffered']
    #allocation8 [shape = 'u8[4096]{0}', space=vmem, size = 0x1000, scoped, tag = 'output window, operand 0']
    %10 = vsyncpa [#allocation3], 0
    %s11 = scalar_lea.sflag [#allocation3], 1
    %12 = vsyncpa %s11, 0
    %13 = vsyncpa [#allocation6], 0
    %14 = vsyncpa [#allocation4], 0
    %s15 = scalar_lea.sflag [#allocation4], 1
    %16 = vsyncpa %s15, 0
    loop: start=0, step=1, limit=4
    $region2: #{tpu_custom_call.1} parent=1 // loop_pre_header
      _
    $region3: #{tpu_custom_call.1} parent=1 // loop_header
      %s18 = sphi 0, %s22
      %p19 = scmp.ge.s32.totalorder %s18, 4
      %s28 = sphi 0, %s30
      %s31 = sphi 0, %s28
      %s32 = sphi 0, %s31
      %s48 = sphi 0, %s32
      %s52 = sphi 0, %s52
      %s54 = sphi 0, %s52
      %s55 = sphi 0, %s54
      %s69 = sphi 0, %s55
      %s73 = sphi 0, %s73
      %s75 = sphi 0, %s73
      %s76 = sphi 0, %s75
      %s90 = sphi 0, %s76
      %s94 = sphi 0, %s94
      %s96 = sphi 0, %s94
      %s97 = sphi 0, %s96
      %s111 = sphi 0, %s97
      %s115 = sphi 0, %s115
      %s117 = sphi 0, %s115
      %s118 = sphi 0, %s117
      %s132 = sphi 0, %s118
      %s138 = sphi 0, %s140
      %s141 = sphi 0, %s138
      %s142 = sphi 0, %s141
      %s158 = sphi 0, %s142
    $region4: #{tpu_custom_call.1} parent=1 // loop_header_branch
      %21 = sbr.rel (%p19) target = $region8
    $region5: #{tpu_custom_call.1} parent=1 // loop_body
      %s23 = ssub.s32 %s18, 1
      %s24 = ssub.s32 %s18, 2
      %s25 = sadd.s32 %s18, 1
      %s26 = ssub.s32 %s18, %s25
      %p27 = scmp.eq.s32.totalorder %s26, 0
      %s29 = sadd.s32 %s28, 1
      %s30 = scalar_select %p27, %s28, %s29
      %p33 = pneg %p27
      %p34 = scmp.eq.s32.totalorder %s18, 1
      %p35 = por %p33, %p34
      %p36 = scmp.ne.s32.totalorder %s28, %s31
      %p37 = scmp.eq.s32.totalorder %s18, 0
      %p38 = por %p36, %p37
      %p39 = scmp.ne.s32.totalorder %s28, %s31
      %p40 = scmp.eq.s32.totalorder %s23, 1
      %p41 = por %p39, %p40
      %p42 = scmp.ne.s32.totalorder %s31, %s32
      %p43 = scmp.eq.s32.totalorder %s23, 0
      %p44 = por %p42, %p43
      %p45 = scmp.ne.s32.totalorder %s31, %s32
      %p46 = scmp.eq.s32.totalorder %s24, 1
      %p47 = por %p45, %p46
      %p49 = scmp.ne.s32.totalorder %s32, %s48
      %p50 = scmp.eq.s32.totalorder %s24, 0
      %p51 = por %p49, %p50
      %s53 = sadd.s32 %s52, 1
      %p56 = scmp.eq.s32.totalorder %s18, 1
      %p57 = scmp.ne.s32.totalorder %s52, %s54
      %p58 = scmp.eq.s32.totalorder %s18, 0
      %p59 = por %p57, %p58
      %p60 = scmp.ne.s32.totalorder %s52, %s54
      %p61 = scmp.eq.s32.totalorder %s23, 1
      %p62 = por %p60, %p61
      %p63 = scmp.ne.s32.totalorder %s54, %s55
      %p64 = scmp.eq.s32.totalorder %s23, 0
      %p65 = por %p63, %p64
      %p66 = scmp.ne.s32.totalorder %s54, %s55
      %p67 = scmp.eq.s32.totalorder %s24, 1
      %p68 = por %p66, %p67
      %p70 = scmp.ne.s32.totalorder %s55, %s69
      %p71 = scmp.eq.s32.totalorder %s24, 0
      %p72 = por %p70, %p71
      %s74 = sadd.s32 %s73, 1
      %p77 = scmp.eq.s32.totalorder %s18, 1
      %p78 = scmp.ne.s32.totalorder %s73, %s75
      %p79 = scmp.eq.s32.totalorder %s18, 0
      %p80 = por %p78, %p79
      %p81 = scmp.ne.s32.totalorder %s73, %s75
      %p82 = scmp.eq.s32.totalorder %s23, 1
      %p83 = por %p81, %p82
      %p84 = scmp.ne.s32.totalorder %s75, %s76
      %p85 = scmp.eq.s32.totalorder %s23, 0
      %p86 = por %p84, %p85
      %p87 = scmp.ne.s32.totalorder %s75, %s76
      %p88 = scmp.eq.s32.totalorder %s24, 1
      %p89 = por %p87, %p88
      %p91 = scmp.ne.s32.totalorder %s76, %s90
      %p92 = scmp.eq.s32.totalorder %s24, 0
      %p93 = por %p91, %p92
      %s95 = sadd.s32 %s94, 1
      %p98 = scmp.eq.s32.totalorder %s18, 1
      %p99 = scmp.ne.s32.totalorder %s94, %s96
      %p100 = scmp.eq.s32.totalorder %s18, 0
      %p101 = por %p99, %p100
      %p102 = scmp.ne.s32.totalorder %s94, %s96
      %p103 = scmp.eq.s32.totalorder %s23, 1
      %p104 = por %p102, %p103
      %p105 = scmp.ne.s32.totalorder %s96, %s97
      %p106 = scmp.eq.s32.totalorder %s23, 0
      %p107 = por %p105, %p106
      %p108 = scmp.ne.s32.totalorder %s96, %s97
      %p109 = scmp.eq.s32.totalorder %s24, 1
      %p110 = por %p108, %p109
      %p112 = scmp.ne.s32.totalorder %s97, %s111
      %p113 = scmp.eq.s32.totalorder %s24, 0
      %p114 = por %p112, %p113
      %s116 = sadd.s32 %s115, 1
      %p119 = scmp.eq.s32.totalorder %s18, 1
      %p120 = scmp.ne.s32.totalorder %s115, %s117
      %p121 = scmp.eq.s32.totalorder %s18, 0
      %p122 = por %p120, %p121
      %p123 = scmp.ne.s32.totalorder %s115, %s117
      %p124 = scmp.eq.s32.totalorder %s23, 1
      %p125 = por %p123, %p124
      %p126 = scmp.ne.s32.totalorder %s117, %s118
      %p127 = scmp.eq.s32.totalorder %s23, 0
      %p128 = por %p126, %p127
      %p129 = scmp.ne.s32.totalorder %s117, %s118
      %p130 = scmp.eq.s32.totalorder %s24, 1
      %p131 = por %p129, %p130
      %p133 = scmp.ne.s32.totalorder %s118, %s132
      %p134 = scmp.eq.s32.totalorder %s24, 0
      %p135 = por %p133, %p134
      %s136 = ssub.s32 %s18, %s25
      %p137 = scmp.eq.s32.totalorder %s136, 0
      %s139 = sadd.s32 %s138, 1
      %s140 = scalar_select %p137, %s138, %s139
      %p143 = pneg %p137
      %p144 = scmp.eq.s32.totalorder %s18, 1
      %p145 = por %p143, %p144
      %p146 = scmp.ne.s32.totalorder %s138, %s141
      %p147 = scmp.eq.s32.totalorder %s18, 0
      %p148 = por %p146, %p147
      %p149 = scmp.ne.s32.totalorder %s138, %s141
      %p150 = scmp.eq.s32.totalorder %s23, 1
      %p151 = por %p149, %p150
      %p152 = scmp.ne.s32.totalorder %s141, %s142
      %p153 = scmp.eq.s32.totalorder %s23, 0
      %p154 = por %p152, %p153
      %p155 = scmp.ne.s32.totalorder %s141, %s142
      %p156 = scmp.eq.s32.totalorder %s24, 1
      %p157 = por %p155, %p156
      %p159 = scmp.ne.s32.totalorder %s142, %s158
      %p160 = scmp.eq.s32.totalorder %s24, 0
      %p161 = por %p159, %p160
      %p162 = scmp.le.s32.totalorder 1, %s18
      %p163 = scmp.lt.s32.totalorder %s18, 3
      %p164 = pnand %p162, %p163
      %p165 = pneg %p164
      // Predicated region
      $region9: #{tpu_custom_call.1} parent=5 // pred_check
        _
      $region10: #{tpu_custom_call.1} parent=5 // pred_check_branch
        %167 = sbr.rel (%p164) target = $region12
      $region11: #{tpu_custom_call.1} parent=5 // pred_region
        %s168 = ssub.s32 %s18, 1
        // Predicated region
        $region13: #{tpu_custom_call.1} parent=11 // pred_check
          %p169 = pneg %p65
        $region14: #{tpu_custom_call.1} parent=11 // pred_check_branch
          %171 = sbr.rel (%p169) target = $region16
        $region15: #{tpu_custom_call.1} parent=11 // pred_region
          %s173 = ssub.s32 2048, 2048
          %174 = vsyncadd [#allocation6], %s173
          %s175 = sshll.u32 [#allocation5], 4
          %s176 = int_to_ptr.vmem [resolvable:$true] %s175
          %181 = dma.hbm_to_vmem [thread:$0]  %s1, 2048, %s176, [#allocation6], 64, 64, 4
        $region16: #{tpu_custom_call.1} parent=11 // pred_fallthru
          _
        // Predicated region
        $region17: #{tpu_custom_call.1} parent=11 // pred_check
          %p182 = pneg %p86
        $region18: #{tpu_custom_call.1} parent=11 // pred_check_branch
          %184 = sbr.rel (%p182) target = $region20
        $region19: #{tpu_custom_call.1} parent=11 // pred_region
          _
        $region20: #{tpu_custom_call.1} parent=11 // pred_fallthru
          _
        // Predicated region
        $region21: #{tpu_custom_call.1} parent=11 // pred_check
          %p185 = pneg %p107
        $region22: #{tpu_custom_call.1} parent=11 // pred_check_branch
          %187 = sbr.rel (%p185) target = $region24
        $region23: #{tpu_custom_call.1} parent=11 // pred_region
          %s189 = ssub.s32 1024, 1024
          %190 = vsyncadd [#allocation6], %s189
          %s191 = sshll.u32 [#allocation7], 4
          %s192 = int_to_ptr.vmem [resolvable:$true] %s191
          %197 = dma.hbm_to_vmem [thread:$0]  %s3, 1024, %s192, [#allocation6], 64, 64, 4
        $region24: #{tpu_custom_call.1} parent=11 // pred_fallthru
          _
        // Predicated region
        $region25: #{tpu_custom_call.1} parent=11 // pred_check
          %p198 = pneg %p128
        $region26: #{tpu_custom_call.1} parent=11 // pred_check_branch
          %200 = sbr.rel (%p198) target = $region28
        $region27: #{tpu_custom_call.1} parent=11 // pred_region
          _
        $region28: #{tpu_custom_call.1} parent=11 // pred_fallthru
          _
      $region12: #{tpu_custom_call.1} parent=5 // pred_fallthru
        _
      %p201 = scmp.lt.s32.totalorder %s18, 2
      // Predicated region
      $region29: #{tpu_custom_call.1} parent=5 // pred_check
        %p202 = pneg %p201
      $region30: #{tpu_custom_call.1} parent=5 // pred_check_branch
        %204 = sbr.rel (%p202) target = $region32
      $region31: #{tpu_custom_call.1} parent=5 // pred_region
        // Predicated region
        $region33: #{tpu_custom_call.1} parent=31 // pred_check
          %p205 = pneg %p38
        $region34: #{tpu_custom_call.1} parent=31 // pred_check_branch
          %207 = sbr.rel (%p205) target = $region36
        $region35: #{tpu_custom_call.1} parent=31 // pred_region
          %s208 = sand.u32 %s28, 1
          %s209 = scalar_lea.sflag [#allocation3], %s208
          %s210 = sand.u32 %s28, 1
          %s211 = smul.addr %s210, 16
          %s212 = scalar_lea.vmem [#allocation2], %s211
          %s214 = ssub.s32 256, 256
          %215 = vsyncadd %s209, %s214
          %s216 = smul.addr %s18, 2
          %s217 = smul.addr %s216, 128
          %s218 = scalar_lea.hbm %s0, %s217
          %s220 = sshll.u32 %s212, 4
          %s221 = int_to_ptr.vmem [resolvable:$true] %s220
          %223 = dma.hbm_to_vmem [thread:$0]  %s218, 256, %s221, %s209
        $region36: #{tpu_custom_call.1} parent=31 // pred_fallthru
          _
      $region32: #{tpu_custom_call.1} parent=5 // pred_fallthru
        _
      %p224 = scmp.le.s32.totalorder 1, %s18
      %p225 = scmp.lt.s32.totalorder %s18, 3
      %p226 = pnand %p224, %p225
      %p227 = pneg %p226
      // Predicated region
      $region37: #{tpu_custom_call.1} parent=5 // pred_check
        _
      $region38: #{tpu_custom_call.1} parent=5 // pred_check_branch
        %229 = sbr.rel (%p226) target = $region40
      $region39: #{tpu_custom_call.1} parent=5 // pred_region
        %s230 = ssub.s32 %s18, 1
        %s231 = sand.u32 %s31, 1
        %s232 = scalar_lea.sflag [#allocation3], %s231
        %s233 = sand.u32 %s31, 1
        %s234 = smul.addr %s233, 16
        %s235 = scalar_lea.vmem [#allocation2], %s234
        // Predicated region
        $region41: #{tpu_custom_call.1} parent=39 // pred_check
          %p236 = pneg %p44
        $region42: #{tpu_custom_call.1} parent=39 // pred_check_branch
          %238 = sbr.rel (%p236) target = $region44
        $region43: #{tpu_custom_call.1} parent=39 // pred_region
          %239 = dma.done %s232, 256
        $region44: #{tpu_custom_call.1} parent=39 // pred_fallthru
          _
        // Predicated region
        $region45: #{tpu_custom_call.1} parent=39 // pred_check
          %p240 = pneg %p65
        $region46: #{tpu_custom_call.1} parent=39 // pred_check_branch
          %242 = sbr.rel (%p240) target = $region48
        $region47: #{tpu_custom_call.1} parent=39 // pred_region
          %243 = dma.done [#allocation6], 2048
        $region48: #{tpu_custom_call.1} parent=39 // pred_fallthru
          _
        // Predicated region
        $region49: #{tpu_custom_call.1} parent=39 // pred_check
          %p244 = pneg %p107
        $region50: #{tpu_custom_call.1} parent=39 // pred_check_branch
          %246 = sbr.rel (%p244) target = $region52
        $region51: #{tpu_custom_call.1} parent=39 // pred_region
          %247 = dma.done [#allocation6], 1024
        $region52: #{tpu_custom_call.1} parent=39 // pred_fallthru
          _
        %s248 = sand.u32 %s31, 1
        %s249 = scalar_lea.sflag [#allocation3], %s248
        %s250 = sand.u32 %s31, 1
        %s251 = smul.addr %s250, 16
        %s252 = scalar_lea.vmem [#allocation2], %s251
        %p253 = pneg %p44
        %p254 = pneg %p41
        %p255 = pneg %p65
        %p256 = pneg %p62
        %p257 = pneg %p86
        %p258 = pneg %p83
        %p259 = pneg %p107
        %p260 = pneg %p104
        %p261 = pneg %p128
        %p262 = pneg %p125
        %p263 = pneg %p154
        %p264 = pneg %p151
        %s265 = sand.u32 %s141, 1
        %s266 = scalar_lea.sflag [#allocation4], %s265
        %s267 = sand.u32 %s141, 1
        %s268 = smul.addr %s267, 4
        %s269 = scalar_lea.vmem [#allocation8], %s268
        %v271 = vld [vmem:[%s235] sm:$0xff]
        %v272 = vld [vmem:[%s235 + $0x8] sm:$0xff]
        %v273 = vpack.c.bf16 %v271, %v271
        %v274 = vpack.c.bf16 %v272, %v272
        %v275 = vld [vmem:[#allocation5] sm:$0xf]
        %v276 = vld [vmem:[#allocation5 + $0x4] sm:$0xf]
        %v277 = vld [vmem:[#allocation5 + $0x8] sm:$0xf]
        %v278 = vld [vmem:[#allocation5 + $0xc] sm:$0xf]
        %v279 = vld [vmem:[#allocation5 + $0x10] sm:$0xf]
        %v280 = vld [vmem:[#allocation5 + $0x14] sm:$0xf]
        %v281 = vld [vmem:[#allocation5 + $0x18] sm:$0xf]
        %v282 = vld [vmem:[#allocation5 + $0x1c] sm:$0xf]
        %v283 = vld [vmem:[#allocation5 + $0x20] sm:$0xf]
        %v284 = vld [vmem:[#allocation5 + $0x24] sm:$0xf]
        %v285 = vld [vmem:[#allocation5 + $0x28] sm:$0xf]
        %v286 = vld [vmem:[#allocation5 + $0x2c] sm:$0xf]
        %v287 = vld [vmem:[#allocation5 + $0x30] sm:$0xf]
        %v288 = vld [vmem:[#allocation5 + $0x34] sm:$0xf]
        %v289 = vld [vmem:[#allocation5 + $0x38] sm:$0xf]
        %v290 = vld [vmem:[#allocation5 + $0x3c] sm:$0xf]
        %v291 = vld [vmem:[#allocation5 + $0x40] sm:$0xf]
        %v292 = vld [vmem:[#allocation5 + $0x44] sm:$0xf]
        %v293 = vld [vmem:[#allocation5 + $0x48] sm:$0xf]
        %v294 = vld [vmem:[#allocation5 + $0x4c] sm:$0xf]
        %v295 = vld [vmem:[#allocation5 + $0x50] sm:$0xf]
        %v296 = vld [vmem:[#allocation5 + $0x54] sm:$0xf]
        %v297 = vld [vmem:[#allocation5 + $0x58] sm:$0xf]
        %v298 = vld [vmem:[#allocation5 + $0x5c] sm:$0xf]
        %v299 = vld [vmem:[#allocation5 + $0x60] sm:$0xf]
        %v300 = vld [vmem:[#allocation5 + $0x64] sm:$0xf]
        %v301 = vld [vmem:[#allocation5 + $0x68] sm:$0xf]
        %v302 = vld [vmem:[#allocation5 + $0x6c] sm:$0xf]
        %v303 = vld [vmem:[#allocation5 + $0x70] sm:$0xf]
        %v304 = vld [vmem:[#allocation5 + $0x74] sm:$0xf]
        %v305 = vld [vmem:[#allocation5 + $0x78] sm:$0xf]
        %v306 = vld [vmem:[#allocation5 + $0x7c] sm:$0xf]
        %v307 = vld [vmem:[%s2] sm:$0x1]
        %v309 = vlaneseq
        %v310 = vshrl.u32 %v309, 7
        %v311 = vsub.s32 0, %v310
        %v312 = vrot.slane %v307, %v311
        %v346 = vunpack.c.l.b16 %v275
        %v347 = vunpack.c.l.b16 %v276
        %v348 = vunpack.c.l.b16 %v277
        %v349 = vunpack.c.l.b16 %v278
        %v350 = vunpack.c.l.b16 %v279
        %v351 = vunpack.c.l.b16 %v280
        %v352 = vunpack.c.l.b16 %v281
        %v353 = vunpack.c.l.b16 %v282
        %v354 = vunpack.c.l.b16 %v283
        %v355 = vunpack.c.l.b16 %v284
        %v356 = vunpack.c.l.b16 %v285
        %v357 = vunpack.c.l.b16 %v286
        %v358 = vunpack.c.l.b16 %v287
        %v359 = vunpack.c.l.b16 %v288
        %v360 = vunpack.c.l.b16 %v289
        %v361 = vunpack.c.l.b16 %v290
        %v362 = vunpack.c.l.b16 %v291
        %v363 = vunpack.c.l.b16 %v292
        %v364 = vunpack.c.l.b16 %v293
        %v365 = vunpack.c.l.b16 %v294
        %v366 = vunpack.c.l.b16 %v295
        %v367 = vunpack.c.l.b16 %v296
        %v368 = vunpack.c.l.b16 %v297
        %v369 = vunpack.c.l.b16 %v298
        %v370 = vunpack.c.l.b16 %v299
        %v371 = vunpack.c.l.b16 %v300
        %v372 = vunpack.c.l.b16 %v301
        %v373 = vunpack.c.l.b16 %v302
        %v374 = vunpack.c.l.b16 %v303
        %v375 = vunpack.c.l.b16 %v304
        %v376 = vunpack.c.l.b16 %v305
        %v377 = vunpack.c.l.b16 %v306
        %v378 = vpack.c.b16 %v347, %v346
        %v379 = vpack.c.b16 %v349, %v348
        %v380 = vpack.c.b16 %v351, %v350
        %v381 = vpack.c.b16 %v353, %v352
        %v382 = vpack.c.b16 %v355, %v354
        %v383 = vpack.c.b16 %v357, %v356
        %v384 = vpack.c.b16 %v359, %v358
        %v385 = vpack.c.b16 %v361, %v360
        %v386 = vpack.c.b16 %v363, %v362
        %v387 = vpack.c.b16 %v365, %v364
        %v388 = vpack.c.b16 %v367, %v366
        %v389 = vpack.c.b16 %v369, %v368
        %v390 = vpack.c.b16 %v371, %v370
        %v391 = vpack.c.b16 %v373, %v372
        %v392 = vpack.c.b16 %v375, %v374
        %v393 = vpack.c.b16 %v377, %v376
        %410 = vmatprep.subr.bf16.mxu0 0
        %411 = vmatpush1.bf16.msra.mxu0 %v378
        %412 = vmatprep.subr.bf16.mxu0 0
        %413 = vmatpush1.bf16.msra.mxu0 %v379
        %414 = vmatprep.subr.bf16.mxu0 0
        %415 = vmatpush1.bf16.msra.mxu0 %v380
        %416 = vmatprep.subr.bf16.mxu0 0
        %417 = vmatpush1.bf16.msra.mxu0 %v381
        %418 = vmatprep.subr.bf16.mxu0 0
        %419 = vmatpush1.bf16.msra.mxu0 %v382
        %420 = vmatprep.subr.bf16.mxu0 0
        %421 = vmatpush1.bf16.msra.mxu0 %v383
        %422 = vmatprep.subr.bf16.mxu0 0
        %423 = vmatpush1.bf16.msra.mxu0 %v384
        %424 = vmatprep.subr.bf16.mxu0 0
        %425 = vmatpush1.bf16.msra.mxu0 %v385
        %426 = vmatprep.subr.bf16.mxu0 0
        %427 = vmatpush1.bf16.msra.mxu0 %v386
        %428 = vmatprep.subr.bf16.mxu0 0
        %429 = vmatpush1.bf16.msra.mxu0 %v387
        %430 = vmatprep.subr.bf16.mxu0 0
        %431 = vmatpush1.bf16.msra.mxu0 %v388
        %432 = vmatprep.subr.bf16.mxu0 0
        %433 = vmatpush1.bf16.msra.mxu0 %v389
        %434 = vmatprep.subr.bf16.mxu0 0
        %435 = vmatpush1.bf16.msra.mxu0 %v390
        %436 = vmatprep.subr.bf16.mxu0 0
        %437 = vmatpush1.bf16.msra.mxu0 %v391
        %438 = vmatprep.subr.bf16.mxu0 0
        %439 = vmatpush1.bf16.msra.mxu0 %v392
        %440 = vmatprep.subr.bf16.mxu0 0
        %441 = vmatpush1.bf16.msra.mxu0 %v393
        %442 = vmatprep.mubr.bf16.mxu0 %v274
        %443 = vmatmul.mubr.bf16.gmra.mrb[0].mxu0 %v273
        %v444 = vpop.f32.mrb[0].mxu0
        %v445 = vadd.f32 %v312, %v444
        %v446 = vpop.f32.mrb[0].mxu0
        %v447 = vpop.f32.mrb[0].mxu0
        %v448 = vpop.f32.mrb[0].mxu0
        %449 = vdwg.mxu0
        %v450 = vmax.f32 %v445, 0.0
        %v451 = vpack.c.bf16 %v450, %v450
        %v452 = vld [vmem:[#allocation7] sm:$0xf]
        %v453 = vld [vmem:[#allocation7 + $0x4] sm:$0xf]
        %v454 = vld [vmem:[#allocation7 + $0x8] sm:$0xf]
        %v455 = vld [vmem:[#allocation7 + $0xc] sm:$0xf]
        %v456 = vld [vmem:[#allocation7 + $0x10] sm:$0xf]
        %v457 = vld [vmem:[#allocation7 + $0x14] sm:$0xf]
        %v458 = vld [vmem:[#allocation7 + $0x18] sm:$0xf]
        %v459 = vld [vmem:[#allocation7 + $0x1c] sm:$0xf]
        %v460 = vld [vmem:[#allocation7 + $0x20] sm:$0xf]
        %v461 = vld [vmem:[#allocation7 + $0x24] sm:$0xf]
        %v462 = vld [vmem:[#allocation7 + $0x28] sm:$0xf]
        %v463 = vld [vmem:[#allocation7 + $0x2c] sm:$0xf]
        %v464 = vld [vmem:[#allocation7 + $0x30] sm:$0xf]
        %v465 = vld [vmem:[#allocation7 + $0x34] sm:$0xf]
        %v466 = vld [vmem:[#allocation7 + $0x38] sm:$0xf]
        %v467 = vld [vmem:[#allocation7 + $0x3c] sm:$0xf]
        %v468 = vld [vmem:[%s4] sm:$0x1]
        %v470 = vlaneseq
        %v471 = vshrl.u32 %v470, 7
        %v472 = vsub.s32 0, %v471
        %v473 = vrot.slane %v468, %v472
        %v491 = vunpack.c.l.b16 %v452
        %v492 = vunpack.c.l.b16 %v453
        %v493 = vunpack.c.l.b16 %v454
        %v494 = vunpack.c.l.b16 %v455
        %v495 = vunpack.c.l.b16 %v456
        %v496 = vunpack.c.l.b16 %v457
        %v497 = vunpack.c.l.b16 %v458
        %v498 = vunpack.c.l.b16 %v459
        %v499 = vunpack.c.l.b16 %v460
        %v500 = vunpack.c.l.b16 %v461
        %v501 = vunpack.c.l.b16 %v462
        %v502 = vunpack.c.l.b16 %v463
        %v503 = vunpack.c.l.b16 %v464
        %v504 = vunpack.c.l.b16 %v465
        %v505 = vunpack.c.l.b16 %v466
        %v506 = vunpack.c.l.b16 %v467
        %v507 = vpack.c.b16 %v492, %v491
        %v508 = vpack.c.b16 %v494, %v493
        %v509 = vpack.c.b16 %v496, %v495
        %v510 = vpack.c.b16 %v498, %v497
        %v511 = vpack.c.b16 %v500, %v499
        %v512 = vpack.c.b16 %v502, %v501
        %v513 = vpack.c.b16 %v504, %v503
        %v514 = vpack.c.b16 %v506, %v505
        %523 = vmatprep.subr.bf16.mxu0 0
        %524 = vmatpush1.bf16.msra.mxu0 %v507
        %525 = vmatprep.subr.bf16.mxu0 0
        %526 = vmatpush1.bf16.msra.mxu0 %v508
        %527 = vmatprep.subr.bf16.mxu0 0
        %528 = vmatpush1.bf16.msra.mxu0 %v509
        %529 = vmatprep.subr.bf16.mxu0 0
        %530 = vmatpush1.bf16.msra.mxu0 %v510
        %531 = vmatprep.subr.bf16.mxu0 0
        %532 = vmatpush1.bf16.msra.mxu0 %v511
        %533 = vmatprep.subr.bf16.mxu0 0
        %534 = vmatpush1.bf16.msra.mxu0 %v512
        %535 = vmatprep.subr.bf16.mxu0 0
        %536 = vmatpush1.bf16.msra.mxu0 %v513
        %537 = vmatprep.subr.bf16.mxu0 0
        %538 = vmatpush1.bf16.msra.mxu0 %v514
        %539 = vmatprep.subr.bf16.mxu0 0
        %540 = vmatpush1.bf16.msra.mxu0 0
        %541 = vmatprep.subr.bf16.mxu0 0
        %542 = vmatpush1.bf16.msra.mxu0 0
        %543 = vmatprep.subr.bf16.mxu0 0
        %544 = vmatpush1.bf16.msra.mxu0 0
        %545 = vmatprep.subr.bf16.mxu0 0
        %546 = vmatpush1.bf16.msra.mxu0 0
        %547 = vmatprep.subr.bf16.mxu0 0
        %548 = vmatpush1.bf16.msra.mxu0 0
        %549 = vmatprep.subr.bf16.mxu0 0
        %550 = vmatpush1.bf16.msra.mxu0 0
        %551 = vmatprep.subr.bf16.mxu0 0
        %552 = vmatpush1.bf16.msra.mxu0 0
        %553 = vmatprep.subr.bf16.mxu0 0
        %554 = vmatpush1.bf16.msra.mxu0 0
        %555 = vmatprep.mubr.bf16.mxu0 0
        %556 = vmatmul.mubr.bf16.gmra.mrb[0].mxu0 %v451
        %v557 = vpop.f32.mrb[0].mxu0
        %v558 = vadd.f32 %v473, %v557
        %v559 = vpop.f32.mrb[0].mxu0
        %v560 = vpop.f32.mrb[0].mxu0
        %v561 = vpop.f32.mrb[0].mxu0
        %562 = vdwg.mxu0
        %v563 = vsub.f32 0.0, %v558
        %v564 = vmul.f32 %v563, 1.442695
        %v565 = vpow.pop %v564
        %v566 = vadd.f32 %v565, 1.0
        %v567 = vrcp.pop %v566
        %v568 = vpack.c.bf16 %v567, %v567
        %569 = vst [vmem:[%s269] sm:$0xf] %v568
        %s570 = sand.u32 %s141, 1
        %s571 = scalar_lea.sflag [#allocation4], %s570
        %s572 = sand.u32 %s141, 1
        %s573 = smul.addr %s572, 4
        %s574 = scalar_lea.vmem [#allocation8], %s573
        // Predicated region
        $region53: #{tpu_custom_call.1} parent=39 // pred_check
          %p575 = pneg %p151
        $region54: #{tpu_custom_call.1} parent=39 // pred_check_branch
          %577 = sbr.rel (%p575) target = $region56
        $region55: #{tpu_custom_call.1} parent=39 // pred_region
          %s579 = ssub.s32 64, 64
          %580 = vsyncadd %s571, %s579
          %s581 = smul.addr %s23, 64
          %s582 = scalar_lea.hbm %s5, %s581
          %s584 = sshll.u32 %s574, 4
          %s585 = int_to_ptr.vmem [resolvable:$true] %s584
          %587 = dma.vmem_to_hbm [thread:$0]  %s585, 64, %s582, %s571
        $region56: #{tpu_custom_call.1} parent=39 // pred_fallthru
          _
      $region40: #{tpu_custom_call.1} parent=5 // pred_fallthru
        _
      %p588 = scmp.le.s32.totalorder 2, %s18
      // Predicated region
      $region57: #{tpu_custom_call.1} parent=5 // pred_check
        %p589 = pneg %p588
      $region58: #{tpu_custom_call.1} parent=5 // pred_check_branch
        %591 = sbr.rel (%p589) target = $region60
      $region59: #{tpu_custom_call.1} parent=5 // pred_region
        %s592 = ssub.s32 %s18, 2
        // Predicated region
        $region61: #{tpu_custom_call.1} parent=59 // pred_check
          %p593 = pneg %p157
        $region62: #{tpu_custom_call.1} parent=59 // pred_check_branch
          %595 = sbr.rel (%p593) target = $region64
        $region63: #{tpu_custom_call.1} parent=59 // pred_region
          %s596 = sand.u32 %s142, 1
          %s597 = scalar_lea.sflag [#allocation4], %s596
          %s598 = sand.u32 %s142, 1
          %s599 = smul.addr %s598, 4
          %s600 = scalar_lea.vmem [#allocation8], %s599
          %601 = dma.done %s597, 64
        $region64: #{tpu_custom_call.1} parent=59 // pred_fallthru
          _
      $region60: #{tpu_custom_call.1} parent=5 // pred_fallthru
        _
    $region6: #{tpu_custom_call.1} parent=1 // loop_footer
      %s22 = sadd.s32 1, %s18
    $region7: #{tpu_custom_call.1} parent=1 // loop_footer_branch
      %17 = sbr.rel target = $region3
    $region8: #{tpu_custom_call.1} parent=1 // loop_exit
      _
    %602 = vsyncpa [#allocation3], 1
    %s603 = scalar_lea.sflag [#allocation3], 1
    %604 = vsyncpa %s603, 1
    %605 = vsyncpa [#allocation6], 1
    %606 = vsyncpa [#allocation4], 1
    %s607 = scalar_lea.sflag [#allocation4], 1
    %608 = vsyncpa %s607, 1

</llo_original>
